<compile_context>
chip_gen: v7x
topology: tpu7x:2x2x1
jax: 0.10.0
libtpu: 0.0.40
codegen_flags: <defaults>
</compile_context>

<pallas_src>
import functools
import math

import jax
import jax.numpy as jnp
from jax.experimental import pallas as pl
from jax.experimental.pallas import tpu as pltpu

LN_EPS = 1e-5             # PyTorch nn.LayerNorm default
BIAS_SENTINEL = -30000.0  # sigmoid(acc + sentinel) == 0 exactly on padded lanes (finite, no NaN)


def _round_up(x, m):
    return ((x + m - 1) // m) * m


def _vmem_budget_bytes():
    """~78% of this generation's per-core VMEM (v7x ~50 MiB, v5e/v6e ~100 MiB)."""
    try:
        cap = int(pltpu.get_tpu_info().vmem_capacity_bytes)
    except Exception:
        cap = 0
    if cap <= 0:
        cap = 64 * 1024 * 1024  # conservative default (v7x-sized)
    return int(cap * 0.78)


def _ffn_kernel(x_ref, w_ref, p_ref, o_ref, *scratch, skip_connection, use_layernorm,
                out_dim, dout_p, tk, num_k):
    # p_ref rows: 0 = bias (padded lanes = BIAS_SENTINEL), 1 = gamma, 2 = beta (padded 0).
    def epilogue(y):
        # y: (TM, dout_p) f32; padded lanes are exactly 0 (bias sentinel + zero-padded x / w).
        if skip_connection:
            y = y + x_ref[:, :dout_p].astype(jnp.float32)   # padded x lanes are zero
        if use_layernorm:
            inv_d = 1.0 / float(out_dim)
            mean = jnp.sum(y, axis=-1, keepdims=True) * inv_d
            mean_sq = jnp.sum(y * y, axis=-1, keepdims=True) * inv_d
            var = jnp.maximum(mean_sq - mean * mean, 0.0)   # guard f32 cancellation
            y = (y - mean) * jax.lax.rsqrt(var + LN_EPS)
            y = y * p_ref[1:2, :] + p_ref[2:3, :]
        o_ref[...] = y.astype(o_ref.dtype)

    # TODO(synk): dropout_rate=None in this config; training-mode dropout would use
    # pltpu.prng_seed / pltpu.prng_random_bits here.

    if num_k == 1:
        # Whole contraction in one MXU call; no accumulator round trip.
        acc = jnp.dot(x_ref[...].astype(jnp.bfloat16), w_ref[...],
                      preferred_element_type=jnp.float32)
        epilogue(jax.nn.sigmoid(acc + p_ref[0:1, :]))
    else:
        acc_ref = scratch[0]
        k = pl.program_id(1)

        @pl.when(k == 0)
        def _():
            acc_ref[...] = jnp.zeros_like(acc_ref)

        off = pl.multiple_of(k * tk, tk)
        xk = x_ref[:, pl.ds(off, tk)].astype(jnp.bfloat16)
        acc_ref[...] += jnp.dot(xk, w_ref[...], preferred_element_type=jnp.float32)

        @pl.when(k == num_k - 1)
        def _():
            epilogue(jax.nn.sigmoid(acc_ref[...] + p_ref[0:1, :]))


def prepare_ffn_params(weight, bias, gamma, beta, *, vmem_budget_bytes=None, force_tk=None):
    """One-time prep (reuse across calls):
      * transpose weight to (Din_p, Dout_p), cast to bf16, pad feature dims to x128,
      * pick the contraction (K) tiling: whole weight VMEM-resident when it fits ~40% of the
        VMEM budget, else a 256-aligned K tile (v6e/v7x MXU is 256 wide),
      * pack bias/gamma/beta into one f32 (3, Dout_p) operand; padded bias lanes get a large
        negative sentinel so the sigmoid zeroes them.
    """
    out_dim, in_dim = weight.shape
    budget = int(vmem_budget_bytes) if vmem_budget_bytes else _vmem_budget_bytes()
    dout_p = _round_up(out_dim, 128)

    din_min = _round_up(in_dim, 128)
    w_budget = int(budget * 0.4)
    if force_tk is not None:
        tk = int(force_tk)
    elif din_min * dout_p * 2 <= w_budget:          # one bf16 copy fits -> fully resident
        tk = din_min
    else:
        tk = 2048
        while tk > 256 and 2 * tk * dout_p * 2 > w_budget:
            tk //= 2
    din_p = _round_up(in_dim, tk)
    num_k = din_p // tk

    w_t = jnp.pad(weight.T.astype(jnp.bfloat16),
                  ((0, din_p - in_dim), (0, dout_p - out_dim)))
    pad_out = dout_p - out_dim
    params = jnp.stack([
        jnp.pad(bias.astype(jnp.float32), (0, pad_out), constant_values=BIAS_SENTINEL),
        jnp.pad(gamma.astype(jnp.float32), (0, pad_out)),
        jnp.pad(beta.astype(jnp.float32), (0, pad_out)),
    ])
    meta = dict(in_dim=in_dim, out_dim=out_dim, din_p=din_p, dout_p=dout_p,
                tk=tk, num_k=num_k, vmem_budget_bytes=budget)
    return w_t, params, meta


def _pick_tm(m, din_p, dout_p, x_bytes, out_bytes, w_resident_bytes, budget, tm_cap):
    """Largest row tile whose working set fits `budget`; >=2 tiles when m allows (v7x megacore)."""
    tm = tm_cap
    if m >= 16:
        tm = min(tm, _round_up((m + 1) // 2, 8))    # at least two "parallel" M tiles
    else:
        tm = min(tm, _round_up(max(m, 1), 8))
    tm = max(8, (tm // 8) * 8)

    def footprint(t):
        return (2 * t * din_p * x_bytes             # double-buffered x row tiles
                + 2 * t * dout_p * out_bytes        # double-buffered output tiles
                + w_resident_bytes                  # weight (multiplicity passed in)
                + 2 * 8 * dout_p * 4                # packed bias/gamma/beta (8-sublane padded)
                + t * dout_p * 4                    # f32 accumulator / matmul result
                + 3 * t * dout_p * 4                # f32 epilogue live set (y, y*y, normalized)
                + t * din_p * 4)                    # x cast to f32 for the skip

    while tm > 8 and footprint(tm) > budget:
        tm = max(8, ((tm // 2) // 8) * 8)
    return tm


def single_feed_forward_nn(x, w_t, params, meta, *, skip_connection=True, use_layernorm=True):
    """x: [..., in_dim]; (w_t, params, meta) are the outputs of prepare_ffn_params."""
    in_dim, out_dim = meta["in_dim"], meta["out_dim"]
    din_p, dout_p = meta["din_p"], meta["dout_p"]
    tk, num_k = meta["tk"], meta["num_k"]
    budget = meta["vmem_budget_bytes"]
    assert x.shape[-1] == in_dim

    lead_shape = x.shape[:-1]
    m = int(math.prod(lead_shape)) if lead_shape else 1
    x2 = x.reshape(m, in_dim)
    x_bytes = jnp.dtype(x.dtype).itemsize

    # Skip connection only when dims match (same rule as the PyTorch module's __init__).
    skip = bool(skip_connection) and (in_dim == out_dim)
    tm_cap = 1024 if budget >= 80 * 1024 * 1024 else 512

    def run(single_buffer):
        if num_k == 1:
            w_resident = (1 if single_buffer else 2) * din_p * dout_p * 2   # bf16 copies
        else:
            w_resident = 2 * tk * dout_p * 2                                # K tile, 2 bufs
        tm = _pick_tm(m, din_p, dout_p, x_bytes, x_bytes, w_resident, budget, tm_cap)
        m_pad = _round_up(m, tm)

        xi = x2
        if m_pad != m or din_p != in_dim:   # skip the extra HBM copy when already aligned
            xi = jnp.pad(x2, ((0, m_pad - m), (0, din_p - in_dim)))

        def const_spec(shape):
            if single_buffer:
                return pl.BlockSpec(shape, lambda i, k: (0, 0),
                                    pipeline_mode=pl.Buffered(1))
            return pl.BlockSpec(shape, lambda i, k: (0, 0))

        x_spec = pl.BlockSpec((tm, din_p), lambda i, k: (i, 0))
        if num_k == 1:
            w_spec = const_spec((din_p, dout_p))
        else:
            w_spec = pl.BlockSpec((tk, dout_p), lambda i, k: (k, 0))
        p_spec = const_spec((3, dout_p))
        out_spec = pl.BlockSpec((tm, dout_p), lambda i, k: (i, 0))
        scratch = [] if num_k == 1 else [pltpu.VMEM((tm, dout_p), jnp.float32)]

        kernel = functools.partial(
            _ffn_kernel, skip_connection=skip, use_layernorm=use_layernorm,
            out_dim=out_dim, dout_p=dout_p, tk=tk, num_k=num_k)

        cost = pl.CostEstimate(
            flops=2 * m_pad * din_p * dout_p,
            transcendentals=m_pad * dout_p,
            bytes_accessed=(m_pad * din_p * x_bytes + din_p * dout_p * 2
                            + 3 * dout_p * 4 + m_pad * dout_p * x_bytes),
        )

        out = pl.pallas_call(
            kernel,
            out_shape=jax.ShapeDtypeStruct((m_pad, dout_p), x.dtype),
            grid=(m_pad // tm, num_k),
            in_specs=[x_spec, w_spec, p_spec],
            out_specs=out_spec,
            scratch_shapes=scratch,
            compiler_params=pltpu.CompilerParams(
                dimension_semantics=("parallel", "arbitrary"),
                vmem_limit_bytes=budget,
            ),
            cost_estimate=cost,
        )(xi, w_t, params)

        if m_pad != m or dout_p != out_dim:
            out = out[:m, :out_dim]
        return out.reshape(*lead_shape, out_dim)

    try:
        return run(single_buffer=True)
    except Exception:
        # pipeline_mode=pl.Buffered(1) not supported on this JAX/Mosaic build; fall back to
        # default double buffering (tile sizing is recomputed to match the 2x weight copies).
        return run(single_buffer=False)


if __name__ == "__main__":
    key = jax.random.PRNGKey(0)

    def torch_like_params(k, in_dim, out_dim):
        kw, kb = jax.random.split(k)
        bound_w = math.sqrt(6.0 / (in_dim + out_dim))            # nn.init.xavier_uniform_
        weight = jax.random.uniform(kw, (out_dim, in_dim), minval=-bound_w,
                                    maxval=bound_w, dtype=jnp.float32)
        bound_b = 1.0 / math.sqrt(in_dim)                        # nn.Linear default bias init
        bias = jax.random.uniform(kb, (out_dim,), minval=-bound_b, maxval=bound_b,
                                  dtype=jnp.float32)
        gamma = jnp.ones((out_dim,), jnp.float32)                # nn.LayerNorm defaults
        beta = jnp.zeros((out_dim,), jnp.float32)
        return weight, bias, gamma, beta

    def reference(xv, weight, bias, gamma, beta):
        y = xv @ weight.T + bias
        y = jax.nn.sigmoid(y)
        y = y + xv                                               # skip (in_dim == out_dim)
        mu = y.mean(-1, keepdims=True)
        var = ((y - mu) ** 2).mean(-1, keepdims=True)
        return (y - mu) / jnp.sqrt(var + LN_EPS) * gamma + beta

    # Case 1: small dims -> weight fully VMEM-resident, single K step.
    batch, seq, dim = 2, 8, 32
    k1, k2, k3 = jax.random.split(key, 3)
    x = jax.random.normal(k1, (batch, seq, dim), dtype=jnp.float32)
    weight, bias, gamma, beta = torch_like_params(k2, dim, dim)
    w_t, params, meta = prepare_ffn_params(weight, bias, gamma, beta)
    out = single_feed_forward_nn(x, w_t, params, meta,
                                 skip_connection=True, use_layernorm=True)
    jax.block_until_ready(out)
    y_ref = reference(x, weight, bias, gamma, beta)
    assert out.shape == (batch, seq, dim)
    # bf16 MXU operands -> looser tolerance than the pure-f32 reference.
    assert jnp.allclose(out, y_ref, atol=2e-2, rtol=2e-2), \
        float(jnp.max(jnp.abs(out - y_ref)))

    # Case 2: exercise the K-tiled accumulate path (contraction split into 2 K tiles).
    dim2 = 512
    x2 = jax.random.normal(k3, (4, 16, dim2), dtype=jnp.float32)
    weight2, bias2, gamma2, beta2 = torch_like_params(k2, dim2, dim2)
    w_t2, params2, meta2 = prepare_ffn_params(weight2, bias2, gamma2, beta2, force_tk=256)
    assert meta2["num_k"] == 2
    out2 = single_feed_forward_nn(x2, w_t2, params2, meta2,
                                  skip_connection=True, use_layernorm=True)
    jax.block_until_ready(out2)
    y_ref2 = reference(x2, weight2, bias2, gamma2, beta2)
    assert out2.shape == x2.shape
    assert jnp.allclose(out2, y_ref2, atol=2e-2, rtol=2e-2), \
        float(jnp.max(jnp.abs(out2 - y_ref2)))

    print("KERNEL_OK")
</pallas_src>

<mosaic_0001>
module attributes {stable_mosaic.version = 11 : i64} {
  func.func @_ffn_kernel(%arg0: i32, %arg1: i32, %arg2: memref<8x128xf32, #tpu.memory_space<vmem>>, %arg3: memref<128x128xbf16, #tpu.memory_space<vmem>>, %arg4: memref<3x128xf32, #tpu.memory_space<vmem>>, %arg5: memref<8x128xf32, #tpu.memory_space<vmem>>) attributes {dimension_semantics = [#tpu.dimension_semantics<parallel>, #tpu.dimension_semantics<arbitrary>], iteration_bounds = array<i64: 2, 1>, scalar_prefetch = 0 : i64, scratch_operands = 0 : i64, tpu.core_type = #tpu.core_type<tc>, window_params = [{transform_indices = @transform_0, window_bounds = array<i64: 8, 128>}, {pipeline_mode = #tpu.pipeline_mode<synchronous>, transform_indices = @transform_1, window_bounds = array<i64: 128, 128>}, {pipeline_mode = #tpu.pipeline_mode<synchronous>, transform_indices = @transform_2, window_bounds = array<i64: 3, 128>}, {transform_indices = @transform_3, window_bounds = array<i64: 8, 128>}]} {
    %c0 = arith.constant 0 : index
    %c0_0 = arith.constant 0 : index
    %0 = vector.load %arg2[%c0, %c0_0] : memref<8x128xf32, #tpu.memory_space<vmem>>, vector<8x128xf32>
    %1 = arith.truncf %0 : vector<8x128xf32> to vector<8x128xbf16>
    %c0_1 = arith.constant 0 : index
    %c0_2 = arith.constant 0 : index
    %2 = vector.load %arg3[%c0_1, %c0_2] : memref<128x128xbf16, #tpu.memory_space<vmem>>, vector<128x128xbf16>
    %cst = arith.constant dense<0.000000e+00> : vector<8x128xf32>
    %3 = tpu.matmul %1, %2, %cst {dimension_numbers = #tpu.dot_dimension_numbers<[1], [0], [0], [1], [0, 0, 1, 1], [], []>} : vector<8x128xbf16>, vector<128x128xbf16>, vector<8x128xf32> -> vector<8x128xf32>
    %c0_3 = arith.constant 0 : index
    %c0_4 = arith.constant 0 : index
    %4 = vector.load %arg4[%c0_3, %c0_4] : memref<3x128xf32, #tpu.memory_space<vmem>>, vector<1x128xf32>
    %5 = vector.broadcast %4 : vector<1x128xf32> to vector<8x128xf32>
    %6 = arith.addf %3, %5 : vector<8x128xf32>
    %7 = arith.negf %6 : vector<8x128xf32>
    %8 = math.exp %7 : vector<8x128xf32>
    %cst_5 = arith.constant 1.000000e+00 : f32
    %9 = vector.broadcast %cst_5 : f32 to vector<8x128xf32>
    %10 = arith.addf %9, %8 : vector<8x128xf32>
    %11 = arith.divf %9, %10 : vector<8x128xf32>
    %c0_6 = arith.constant 0 : index
    %c0_7 = arith.constant 0 : index
    %12 = vector.load %arg2[%c0_6, %c0_7] : memref<8x128xf32, #tpu.memory_space<vmem>>, vector<8x128xf32>
    %13 = arith.addf %11, %12 : vector<8x128xf32>
    %cst_8 = arith.constant dense<0.000000e+00> : vector<8xf32>
    %14 = vector.multi_reduction <add>, %13, %cst_8 [1] : vector<8x128xf32> to vector<8xf32>
    %15 = vector.shape_cast %14 : vector<8xf32> to vector<8x1xf32>
    %cst_9 = arith.constant 3.125000e-02 : f32
    %16 = vector.broadcast %cst_9 : f32 to vector<8x1xf32>
    %17 = arith.mulf %15, %16 : vector<8x1xf32>
    %18 = arith.mulf %13, %13 : vector<8x128xf32>
    %cst_10 = arith.constant dense<0.000000e+00> : vector<8xf32>
    %19 = vector.multi_reduction <add>, %18, %cst_10 [1] : vector<8x128xf32> to vector<8xf32>
    %20 = vector.shape_cast %19 : vector<8xf32> to vector<8x1xf32>
    %cst_11 = arith.constant 3.125000e-02 : f32
    %21 = vector.broadcast %cst_11 : f32 to vector<8x1xf32>
    %22 = arith.mulf %20, %21 : vector<8x1xf32>
    %23 = arith.mulf %17, %17 : vector<8x1xf32>
    %24 = arith.subf %22, %23 : vector<8x1xf32>
    %cst_12 = arith.constant 0.000000e+00 : f32
    %25 = vector.broadcast %cst_12 : f32 to vector<8x1xf32>
    %26 = arith.maximumf %24, %25 : vector<8x1xf32>
    %27 = vector.broadcast %17 : vector<8x1xf32> to vector<8x128xf32>
    %28 = arith.subf %13, %27 : vector<8x128xf32>
    %cst_13 = arith.constant 9.99999974E-6 : f32
    %29 = vector.broadcast %cst_13 : f32 to vector<8x1xf32>
    %30 = arith.addf %26, %29 : vector<8x1xf32>
    %31 = math.rsqrt %30 : vector<8x1xf32>
    %32 = vector.broadcast %31 : vector<8x1xf32> to vector<8x128xf32>
    %33 = arith.mulf %28, %32 : vector<8x128xf32>
    %c1 = arith.constant 1 : index
    %c0_14 = arith.constant 0 : index
    %34 = vector.load %arg4[%c1, %c0_14] : memref<3x128xf32, #tpu.memory_space<vmem>>, vector<1x128xf32>
    %35 = vector.broadcast %34 : vector<1x128xf32> to vector<8x128xf32>
    %36 = arith.mulf %33, %35 : vector<8x128xf32>
    %c2 = arith.constant 2 : index
    %c0_15 = arith.constant 0 : index
    %37 = vector.load %arg4[%c2, %c0_15] : memref<3x128xf32, #tpu.memory_space<vmem>>, vector<1x128xf32>
    %38 = vector.broadcast %37 : vector<1x128xf32> to vector<8x128xf32>
    %39 = arith.addf %36, %38 : vector<8x128xf32>
    %c0_16 = arith.constant 0 : index
    %c0_17 = arith.constant 0 : index
    %40 = vector.load %arg5[%c0_16, %c0_17] : memref<8x128xf32, #tpu.memory_space<vmem>>, vector<8x128xf32>
    tpu.vector_store %arg5[%c0_16, %c0_17], %39 {strides = array<i32>} : memref<8x128xf32, #tpu.memory_space<vmem>>, vector<8x128xf32>,
    return
  }
  func.func @transform_0(%arg0: i32, %arg1: i32) -> (i32, i32) {
    %c0_i32 = arith.constant 0 : i32
    %c0_i32_0 = arith.constant 0 : i32
    return %arg0, %c0_i32 : i32, i32
  }
  func.func @transform_1(%arg0: i32, %arg1: i32) -> (i32, i32) {
    %c0_i32 = arith.constant 0 : i32
    %c0_i32_0 = arith.constant 0 : i32
    %c0_i32_1 = arith.constant 0 : i32
    return %c0_i32, %c0_i32_0 : i32, i32
  }
  func.func @transform_2(%arg0: i32, %arg1: i32) -> (i32, i32) {
    %c0_i32 = arith.constant 0 : i32
    %c0_i32_0 = arith.constant 0 : i32
    %c0_i32_1 = arith.constant 0 : i32
    return %c0_i32, %c0_i32_0 : i32, i32
  }
  func.func @transform_3(%arg0: i32, %arg1: i32) -> (i32, i32) {
    %c0_i32 = arith.constant 0 : i32
    %c0_i32_0 = arith.constant 0 : i32
    return %arg0, %c0_i32 : i32, i32
  }
}

module attributes {stable_mosaic.version = 11 : i64} {
  func.func @_ffn_kernel(%arg0: i32, %arg1: i32, %arg2: memref<8x128xf32, #tpu.memory_space<vmem>>, %arg3: memref<128x128xbf16, #tpu.memory_space<vmem>>, %arg4: memref<3x128xf32, #tpu.memory_space<vmem>>, %arg5: memref<8x128xf32, #tpu.memory_space<vmem>>) attributes {dimension_semantics = [#tpu.dimension_semantics<parallel>, #tpu.dimension_semantics<arbitrary>], iteration_bounds = array<i64: 2, 1>, scalar_prefetch = 0 : i64, scratch_operands = 0 : i64, tpu.core_type = #tpu.core_type<tc>, window_params = [{transform_indices = @transform_0, window_bounds = array<i64: 8, 128>}, {pipeline_mode = #tpu.pipeline_mode<synchronous>, transform_indices = @transform_1, window_bounds = array<i64: 128, 128>}, {pipeline_mode = #tpu.pipeline_mode<synchronous>, transform_indices = @transform_2, window_bounds = array<i64: 3, 128>}, {transform_indices = @transform_3, window_bounds = array<i64: 8, 128>}]} {
    %c0 = arith.constant 0 : index
    %c0_0 = arith.constant 0 : index
    %0 = vector.load %arg2[%c0, %c0_0] : memref<8x128xf32, #tpu.memory_space<vmem>>, vector<8x128xf32>
    %1 = arith.truncf %0 : vector<8x128xf32> to vector<8x128xbf16>
    %c0_1 = arith.constant 0 : index
    %c0_2 = arith.constant 0 : index
    %2 = vector.load %arg3[%c0_1, %c0_2] : memref<128x128xbf16, #tpu.memory_space<vmem>>, vector<128x128xbf16>
    %cst = arith.constant dense<0.000000e+00> : vector<8x128xf32>
    %3 = tpu.matmul %1, %2, %cst {dimension_numbers = #tpu.dot_dimension_numbers<[1], [0], [0], [1], [0, 0, 1, 1], [], []>} : vector<8x128xbf16>, vector<128x128xbf16>, vector<8x128xf32> -> vector<8x128xf32>
    %c0_3 = arith.constant 0 : index
    %c0_4 = arith.constant 0 : index
    %4 = vector.load %arg4[%c0_3, %c0_4] : memref<3x128xf32, #tpu.memory_space<vmem>>, vector<1x128xf32>
    %5 = vector.broadcast %4 : vector<1x128xf32> to vector<8x128xf32>
    %6 = arith.addf %3, %5 : vector<8x128xf32>
    %7 = arith.negf %6 : vector<8x128xf32>
    %8 = math.exp %7 : vector<8x128xf32>
    %cst_5 = arith.constant 1.000000e+00 : f32
    %9 = vector.broadcast %cst_5 : f32 to vector<8x128xf32>
    %10 = arith.addf %9, %8 : vector<8x128xf32>
    %11 = arith.divf %9, %10 : vector<8x128xf32>
    %c0_6 = arith.constant 0 : index
    %c0_7 = arith.constant 0 : index
    %12 = vector.load %arg2[%c0_6, %c0_7] : memref<8x128xf32, #tpu.memory_space<vmem>>, vector<8x128xf32>
    %13 = arith.addf %11, %12 : vector<8x128xf32>
    %cst_8 = arith.constant dense<0.000000e+00> : vector<8xf32>
    %14 = vector.multi_reduction <add>, %13, %cst_8 [1] : vector<8x128xf32> to vector<8xf32>
    %15 = vector.shape_cast %14 : vector<8xf32> to vector<8x1xf32>
    %cst_9 = arith.constant 3.125000e-02 : f32
    %16 = vector.broadcast %cst_9 : f32 to vector<8x1xf32>
    %17 = arith.mulf %15, %16 : vector<8x1xf32>
    %18 = arith.mulf %13, %13 : vector<8x128xf32>
    %cst_10 = arith.constant dense<0.000000e+00> : vector<8xf32>
    %19 = vector.multi_reduction <add>, %18, %cst_10 [1] : vector<8x128xf32> to vector<8xf32>
    %20 = vector.shape_cast %19 : vector<8xf32> to vector<8x1xf32>
    %cst_11 = arith.constant 3.125000e-02 : f32
    %21 = vector.broadcast %cst_11 : f32 to vector<8x1xf32>
    %22 = arith.mulf %20, %21 : vector<8x1xf32>
    %23 = arith.mulf %17, %17 : vector<8x1xf32>
    %24 = arith.subf %22, %23 : vector<8x1xf32>
    %cst_12 = arith.constant 0.000000e+00 : f32
    %25 = vector.broadcast %cst_12 : f32 to vector<8x1xf32>
    %26 = arith.maximumf %24, %25 : vector<8x1xf32>
    %27 = vector.broadcast %17 : vector<8x1xf32> to vector<8x128xf32>
    %28 = arith.subf %13, %27 : vector<8x128xf32>
    %cst_13 = arith.constant 9.99999974E-6 : f32
    %29 = vector.broadcast %cst_13 : f32 to vector<8x1xf32>
    %30 = arith.addf %26, %29 : vector<8x1xf32>
    %31 = math.rsqrt %30 : vector<8x1xf32>
    %32 = vector.broadcast %31 : vector<8x1xf32> to vector<8x128xf32>
    %33 = arith.mulf %28, %32 : vector<8x128xf32>
    %c1 = arith.constant 1 : index
    %c0_14 = arith.constant 0 : index
    %34 = vector.load %arg4[%c1, %c0_14] : memref<3x128xf32, #tpu.memory_space<vmem>>, vector<1x128xf32>
    %35 = vector.broadcast %34 : vector<1x128xf32> to vector<8x128xf32>
    %36 = arith.mulf %33, %35 : vector<8x128xf32>
    %c2 = arith.constant 2 : index
    %c0_15 = arith.constant 0 : index
    %37 = vector.load %arg4[%c2, %c0_15] : memref<3x128xf32, #tpu.memory_space<vmem>>, vector<1x128xf32>
    %38 = vector.broadcast %37 : vector<1x128xf32> to vector<8x128xf32>
    %39 = arith.addf %36, %38 : vector<8x128xf32>
    %c0_16 = arith.constant 0 : index
    %c0_17 = arith.constant 0 : index
    %40 = vector.load %arg5[%c0_16, %c0_17] : memref<8x128xf32, #tpu.memory_space<vmem>>, vector<8x128xf32>
    tpu.vector_store %arg5[%c0_16, %c0_17], %39 {strides = array<i32>} : memref<8x128xf32, #tpu.memory_space<vmem>>, vector<8x128xf32>,
    return
  }
  func.func @transform_0(%arg0: i32, %arg1: i32) -> (i32, i32) {
    %c0_i32 = arith.constant 0 : i32
    %c0_i32_0 = arith.constant 0 : i32
    return %arg0, %c0_i32 : i32, i32
  }
  func.func @transform_1(%arg0: i32, %arg1: i32) -> (i32, i32) {
    %c0_i32 = arith.constant 0 : i32
    %c0_i32_0 = arith.constant 0 : i32
    %c0_i32_1 = arith.constant 0 : i32
    return %c0_i32, %c0_i32_0 : i32, i32
  }
  func.func @transform_2(%arg0: i32, %arg1: i32) -> (i32, i32) {
    %c0_i32 = arith.constant 0 : i32
    %c0_i32_0 = arith.constant 0 : i32
    %c0_i32_1 = arith.constant 0 : i32
    return %c0_i32, %c0_i32_0 : i32, i32
  }
  func.func @transform_3(%arg0: i32, %arg1: i32) -> (i32, i32) {
    %c0_i32 = arith.constant 0 : i32
    %c0_i32_0 = arith.constant 0 : i32
    return %arg0, %c0_i32 : i32, i32
  }
}

</mosaic_0001>

<llo_original>
// kernel: tpu_custom_call.1
$region0: #{tpu_custom_call.1}
  #allocation0 [shape = 'u32[]', space=smem, size = 0x4, offset = 0x4, fixed_abs, tag = 'smem constant byte address 0x4 - core index']
  #allocation1 [shape = 'u32[144,128]{1,0:T(1,128)}', space=vmem, size = 0x12000, scoped, tag = 'internal scratch']
  %s0 = inlined_call_operand.hbm [shape: f32[16,128], index: 0, kind: input, shape index: {}]
  %s1 = inlined_call_operand.hbm [shape: bf16[128,128], index: 1, kind: input, shape index: {}]
  %s2 = inlined_call_operand.vmem [shape: f32[3,128], index: 2, kind: input, shape index: {}]
  %s3 = inlined_call_operand.hbm [shape: f32[16,128], index: 3, kind: output, shape index: {}]
  %s4 = sld [smem:[#allocation0]]
  $region53: #{tpu_custom_call.1} parent=0
    _
  %s6 = ssub.s32 1, %s4
  %s7 = scalar_select 0, %s6, %s4
  $region1: #{tpu_custom_call.1} parent=0
    #allocation2 [shape = 'u8[8192]{0}', space=vmem, size = 0x2000, scoped, tag = 'input window, operand 0']
    #allocation3 [shape = 's32[2]{0}', space=sflag, size = 0x8, scoped, tag = 'scoped memory for tpu_custom_call.1']
    #allocation4 [shape = 's32[2]{0}', space=sflag, size = 0x8, scoped, tag = 'scoped memory for tpu_custom_call.1']
    #allocation5 [shape = 'u8[32768]{0}', space=vmem, size = 0x8000, scoped, tag = 'input window, operand 1, single buffered']
    #allocation6 [shape = 's32[1]{0}', space=sflag, size = 0x4, scoped, tag = 'scoped memory for tpu_custom_call.1']
    #allocation7 [shape = 'u8[8192]{0}', space=vmem, size = 0x2000, scoped, tag = 'output window, operand 0']
    %8 = vsyncpa [#allocation3], 0
    %s9 = scalar_lea.sflag [#allocation3], 1
    %10 = vsyncpa %s9, 0
    %11 = vsyncpa [#allocation6], 0
    %12 = vsyncpa [#allocation4], 0
    %s13 = scalar_lea.sflag [#allocation4], 1
    %14 = vsyncpa %s13, 0
    loop: start=0, step=1, limit=4
    $region2: #{tpu_custom_call.1} parent=1 // loop_pre_header
      _
    $region3: #{tpu_custom_call.1} parent=1 // loop_header
      %s16 = sphi 0, %s20
      %p17 = scmp.ge.s32.totalorder %s16, 4
      %s23 = sphi 0, %s35
      %s24 = sphi 0, %s31
      %s25 = sphi 0, %s23
      %s26 = sphi 0, %s24
      %s27 = sphi 0, %s25
      %s28 = sphi 0, %s26
      %s38 = sphi 0, %s40
      %s41 = sphi 0, %s38
      %s42 = sphi 0, %s41
      %s58 = sphi 0, %s42
      %s62 = sphi 0, %s62
      %s64 = sphi 0, %s62
      %s65 = sphi 0, %s64
      %s79 = sphi 0, %s65
      %s83 = sphi 0, %s83
      %s85 = sphi 0, %s83
      %s86 = sphi 0, %s85
      %s100 = sphi 0, %s86
      %s106 = sphi 0, %s108
      %s109 = sphi 0, %s106
      %s110 = sphi 0, %s109
      %s126 = sphi 0, %s110
    $region4: #{tpu_custom_call.1} parent=1 // loop_header_branch
      %19 = sbr.rel (%p17) target = $region8
    $region5: #{tpu_custom_call.1} parent=1 // loop_body
      %s21 = ssub.s32 %s16, 1
      %s22 = ssub.s32 %s16, 2
      %s29 = sadd.s32 1, %s24
      %p30 = scmp.ge.s32.totalorder %s29, 1
      %s31 = scalar_select %p30, 0, %s29
      %s32 = sadd.s32 1, %s23
      %s33 = scalar_select %p30, %s32, %s23
      %p34 = scmp.ge.s32.totalorder %s33, 2
      %s35 = scalar_select %p34, 0, %s33
      %s36 = ssub.s32 %s23, %s35
      %p37 = scmp.eq.s32.totalorder %s36, 0
      %s39 = sadd.s32 %s38, 1
      %s40 = scalar_select %p37, %s38, %s39
      %p43 = pneg %p37
      %p44 = scmp.eq.s32.totalorder %s16, 1
      %p45 = por %p43, %p44
      %p46 = scmp.ne.s32.totalorder %s38, %s41
      %p47 = scmp.eq.s32.totalorder %s16, 0
      %p48 = por %p46, %p47
      %p49 = scmp.ne.s32.totalorder %s38, %s41
      %p50 = scmp.eq.s32.totalorder %s21, 1
      %p51 = por %p49, %p50
      %p52 = scmp.ne.s32.totalorder %s41, %s42
      %p53 = scmp.eq.s32.totalorder %s21, 0
      %p54 = por %p52, %p53
      %p55 = scmp.ne.s32.totalorder %s41, %s42
      %p56 = scmp.eq.s32.totalorder %s22, 1
      %p57 = por %p55, %p56
      %p59 = scmp.ne.s32.totalorder %s42, %s58
      %p60 = scmp.eq.s32.totalorder %s22, 0
      %p61 = por %p59, %p60
      %s63 = sadd.s32 %s62, 1
      %p66 = scmp.eq.s32.totalorder %s16, 1
      %p67 = scmp.ne.s32.totalorder %s62, %s64
      %p68 = scmp.eq.s32.totalorder %s16, 0
      %p69 = por %p67, %p68
      %p70 = scmp.ne.s32.totalorder %s62, %s64
      %p71 = scmp.eq.s32.totalorder %s21, 1
      %p72 = por %p70, %p71
      %p73 = scmp.ne.s32.totalorder %s64, %s65
      %p74 = scmp.eq.s32.totalorder %s21, 0
      %p75 = por %p73, %p74
      %p76 = scmp.ne.s32.totalorder %s64, %s65
      %p77 = scmp.eq.s32.totalorder %s22, 1
      %p78 = por %p76, %p77
      %p80 = scmp.ne.s32.totalorder %s65, %s79
      %p81 = scmp.eq.s32.totalorder %s22, 0
      %p82 = por %p80, %p81
      %s84 = sadd.s32 %s83, 1
      %p87 = scmp.eq.s32.totalorder %s16, 1
      %p88 = scmp.ne.s32.totalorder %s83, %s85
      %p89 = scmp.eq.s32.totalorder %s16, 0
      %p90 = por %p88, %p89
      %p91 = scmp.ne.s32.totalorder %s83, %s85
      %p92 = scmp.eq.s32.totalorder %s21, 1
      %p93 = por %p91, %p92
      %p94 = scmp.ne.s32.totalorder %s85, %s86
      %p95 = scmp.eq.s32.totalorder %s21, 0
      %p96 = por %p94, %p95
      %p97 = scmp.ne.s32.totalorder %s85, %s86
      %p98 = scmp.eq.s32.totalorder %s22, 1
      %p99 = por %p97, %p98
      %p101 = scmp.ne.s32.totalorder %s86, %s100
      %p102 = scmp.eq.s32.totalorder %s22, 0
      %p103 = por %p101, %p102
      %s104 = ssub.s32 %s23, %s35
      %p105 = scmp.eq.s32.totalorder %s104, 0
      %s107 = sadd.s32 %s106, 1
      %s108 = scalar_select %p105, %s106, %s107
      %p111 = pneg %p105
      %p112 = scmp.eq.s32.totalorder %s16, 1
      %p113 = por %p111, %p112
      %p114 = scmp.ne.s32.totalorder %s106, %s109
      %p115 = scmp.eq.s32.totalorder %s16, 0
      %p116 = por %p114, %p115
      %p117 = scmp.ne.s32.totalorder %s106, %s109
      %p118 = scmp.eq.s32.totalorder %s21, 1
      %p119 = por %p117, %p118
      %p120 = scmp.ne.s32.totalorder %s109, %s110
      %p121 = scmp.eq.s32.totalorder %s21, 0
      %p122 = por %p120, %p121
      %p123 = scmp.ne.s32.totalorder %s109, %s110
      %p124 = scmp.eq.s32.totalorder %s22, 1
      %p125 = por %p123, %p124
      %p127 = scmp.ne.s32.totalorder %s110, %s126
      %p128 = scmp.eq.s32.totalorder %s22, 0
      %p129 = por %p127, %p128
      %p130 = scmp.le.s32.totalorder 1, %s16
      %p131 = scmp.lt.s32.totalorder %s16, 3
      %p132 = pnand %p130, %p131
      %p133 = pneg %p132
      // Predicated region
      $region9: #{tpu_custom_call.1} parent=5 // pred_check
        _
      $region10: #{tpu_custom_call.1} parent=5 // pred_check_branch
        %135 = sbr.rel (%p132) target = $region12
      $region11: #{tpu_custom_call.1} parent=5 // pred_region
        %s136 = ssub.s32 %s16, 1
        // Predicated region
        $region13: #{tpu_custom_call.1} parent=11 // pred_check
          %p137 = pneg %p75
        $region14: #{tpu_custom_call.1} parent=11 // pred_check_branch
          %139 = sbr.rel (%p137) target = $region16
        $region15: #{tpu_custom_call.1} parent=11 // pred_region
          %s141 = ssub.s32 1024, 1024
          %142 = vsyncadd [#allocation6], %s141
          %s143 = sshll.u32 [#allocation5], 4
          %s144 = int_to_ptr.vmem [resolvable:$true] %s143
          %149 = dma.hbm_to_vmem [thread:$0]  %s1, 1024, %s144, [#allocation6], 64, 64, 4
        $region16: #{tpu_custom_call.1} parent=11 // pred_fallthru
          _
        // Predicated region
        $region17: #{tpu_custom_call.1} parent=11 // pred_check
          %p150 = pneg %p96
        $region18: #{tpu_custom_call.1} parent=11 // pred_check_branch
          %152 = sbr.rel (%p150) target = $region20
        $region19: #{tpu_custom_call.1} parent=11 // pred_region
          _
        $region20: #{tpu_custom_call.1} parent=11 // pred_fallthru
          _
      $region12: #{tpu_custom_call.1} parent=5 // pred_fallthru
        _
      %p153 = scmp.lt.s32.totalorder %s16, 2
      // Predicated region
      $region21: #{tpu_custom_call.1} parent=5 // pred_check
        %p154 = pneg %p153
      $region22: #{tpu_custom_call.1} parent=5 // pred_check_branch
        %156 = sbr.rel (%p154) target = $region24
      $region23: #{tpu_custom_call.1} parent=5 // pred_region
        // Predicated region
        $region25: #{tpu_custom_call.1} parent=23 // pred_check
          %p157 = pneg %p48
        $region26: #{tpu_custom_call.1} parent=23 // pred_check_branch
          %159 = sbr.rel (%p157) target = $region28
        $region27: #{tpu_custom_call.1} parent=23 // pred_region
          %s160 = sand.u32 %s38, 1
          %s161 = scalar_lea.sflag [#allocation3], %s160
          %s162 = sand.u32 %s38, 1
          %s163 = smul.addr %s162, 8
          %s164 = scalar_lea.vmem [#allocation2], %s163
          %s166 = ssub.s32 128, 128
          %167 = vsyncadd %s161, %s166
          %s168 = smul.addr %s23, 128
          %s169 = scalar_lea.hbm %s0, %s168
          %s171 = sshll.u32 %s164, 4
          %s172 = int_to_ptr.vmem [resolvable:$true] %s171
          %174 = dma.hbm_to_vmem [thread:$0]  %s169, 128, %s172, %s161
        $region28: #{tpu_custom_call.1} parent=23 // pred_fallthru
          _
      $region24: #{tpu_custom_call.1} parent=5 // pred_fallthru
        _
      %p175 = scmp.le.s32.totalorder 1, %s16
      %p176 = scmp.lt.s32.totalorder %s16, 3
      %p177 = pnand %p175, %p176
      %p178 = pneg %p177
      // Predicated region
      $region29: #{tpu_custom_call.1} parent=5 // pred_check
        _
      $region30: #{tpu_custom_call.1} parent=5 // pred_check_branch
        %180 = sbr.rel (%p177) target = $region32
      $region31: #{tpu_custom_call.1} parent=5 // pred_region
        %s181 = ssub.s32 %s16, 1
        %s182 = sand.u32 %s41, 1
        %s183 = scalar_lea.sflag [#allocation3], %s182
        %s184 = sand.u32 %s41, 1
        %s185 = smul.addr %s184, 8
        %s186 = scalar_lea.vmem [#allocation2], %s185
        // Predicated region
        $region33: #{tpu_custom_call.1} parent=31 // pred_check
          %p187 = pneg %p54
        $region34: #{tpu_custom_call.1} parent=31 // pred_check_branch
          %189 = sbr.rel (%p187) target = $region36
        $region35: #{tpu_custom_call.1} parent=31 // pred_region
          %190 = dma.done %s183, 128
        $region36: #{tpu_custom_call.1} parent=31 // pred_fallthru
          _
        // Predicated region
        $region37: #{tpu_custom_call.1} parent=31 // pred_check
          %p191 = pneg %p75
        $region38: #{tpu_custom_call.1} parent=31 // pred_check_branch
          %193 = sbr.rel (%p191) target = $region40
        $region39: #{tpu_custom_call.1} parent=31 // pred_region
          %194 = dma.done [#allocation6], 1024
        $region40: #{tpu_custom_call.1} parent=31 // pred_fallthru
          _
        %s195 = sand.u32 %s41, 1
        %s196 = scalar_lea.sflag [#allocation3], %s195
        %s197 = sand.u32 %s41, 1
        %s198 = smul.addr %s197, 8
        %s199 = scalar_lea.vmem [#allocation2], %s198
        %p200 = pneg %p54
        %p201 = pneg %p51
        %p202 = pneg %p75
        %p203 = pneg %p72
        %p204 = pneg %p96
        %p205 = pneg %p93
        %p206 = pneg %p122
        %p207 = pneg %p119
        %s208 = sand.u32 %s109, 1
        %s209 = scalar_lea.sflag [#allocation4], %s208
        %s210 = sand.u32 %s109, 1
        %s211 = smul.addr %s210, 8
        %s212 = scalar_lea.vmem [#allocation7], %s211
        %v214 = vld [vmem:[%s186] sm:$0xff]
        %v215 = vpack.c.bf16 %v214, %v214
        %v216 = vld [vmem:[#allocation5] sm:$0xf]
        %v217 = vld [vmem:[#allocation5 + $0x4] sm:$0xf]
        %v218 = vld [vmem:[#allocation5 + $0x8] sm:$0xf]
        %v219 = vld [vmem:[#allocation5 + $0xc] sm:$0xf]
        %v220 = vld [vmem:[#allocation5 + $0x10] sm:$0xf]
        %v221 = vld [vmem:[#allocation5 + $0x14] sm:$0xf]
        %v222 = vld [vmem:[#allocation5 + $0x18] sm:$0xf]
        %v223 = vld [vmem:[#allocation5 + $0x1c] sm:$0xf]
        %v224 = vld [vmem:[#allocation5 + $0x20] sm:$0xf]
        %v225 = vld [vmem:[#allocation5 + $0x24] sm:$0xf]
        %v226 = vld [vmem:[#allocation5 + $0x28] sm:$0xf]
        %v227 = vld [vmem:[#allocation5 + $0x2c] sm:$0xf]
        %v228 = vld [vmem:[#allocation5 + $0x30] sm:$0xf]
        %v229 = vld [vmem:[#allocation5 + $0x34] sm:$0xf]
        %v230 = vld [vmem:[#allocation5 + $0x38] sm:$0xf]
        %v231 = vld [vmem:[#allocation5 + $0x3c] sm:$0xf]
        %v232 = vld [vmem:[%s2] sm:$0x1]
        %v233 = vlaneseq
        %v234 = vshrl.u32 %v233, 7
        %v235 = vsub.s32 0, %v234
        %v236 = vrot.slane %v232, %v235
        %v253 = vunpack.c.l.b16 %v216
        %v254 = vunpack.c.l.b16 %v217
        %v255 = vunpack.c.l.b16 %v218
        %v256 = vunpack.c.l.b16 %v219
        %v257 = vunpack.c.l.b16 %v220
        %v258 = vunpack.c.l.b16 %v221
        %v259 = vunpack.c.l.b16 %v222
        %v260 = vunpack.c.l.b16 %v223
        %v261 = vunpack.c.l.b16 %v224
        %v262 = vunpack.c.l.b16 %v225
        %v263 = vunpack.c.l.b16 %v226
        %v264 = vunpack.c.l.b16 %v227
        %v265 = vunpack.c.l.b16 %v228
        %v266 = vunpack.c.l.b16 %v229
        %v267 = vunpack.c.l.b16 %v230
        %v268 = vunpack.c.l.b16 %v231
        %v269 = vpack.c.b16 %v254, %v253
        %v270 = vpack.c.b16 %v256, %v255
        %v271 = vpack.c.b16 %v258, %v257
        %v272 = vpack.c.b16 %v260, %v259
        %v273 = vpack.c.b16 %v262, %v261
        %v274 = vpack.c.b16 %v264, %v263
        %v275 = vpack.c.b16 %v266, %v265
        %v276 = vpack.c.b16 %v268, %v267
        %285 = vmatprep.subr.bf16.mxu0 0
        %286 = vmatpush1.bf16.msra.mxu0 %v269
        %287 = vmatprep.subr.bf16.mxu0 0
        %288 = vmatpush1.bf16.msra.mxu0 %v270
        %289 = vmatprep.subr.bf16.mxu0 0
        %290 = vmatpush1.bf16.msra.mxu0 %v271
        %291 = vmatprep.subr.bf16.mxu0 0
        %292 = vmatpush1.bf16.msra.mxu0 %v272
        %293 = vmatprep.subr.bf16.mxu0 0
        %294 = vmatpush1.bf16.msra.mxu0 %v273
        %295 = vmatprep.subr.bf16.mxu0 0
        %296 = vmatpush1.bf16.msra.mxu0 %v274
        %297 = vmatprep.subr.bf16.mxu0 0
        %298 = vmatpush1.bf16.msra.mxu0 %v275
        %299 = vmatprep.subr.bf16.mxu0 0
        %300 = vmatpush1.bf16.msra.mxu0 %v276
        %301 = vmatprep.subr.bf16.mxu0 0
        %302 = vmatpush1.bf16.msra.mxu0 0
        %303 = vmatprep.subr.bf16.mxu0 0
        %304 = vmatpush1.bf16.msra.mxu0 0
        %305 = vmatprep.subr.bf16.mxu0 0
        %306 = vmatpush1.bf16.msra.mxu0 0
        %307 = vmatprep.subr.bf16.mxu0 0
        %308 = vmatpush1.bf16.msra.mxu0 0
        %309 = vmatprep.subr.bf16.mxu0 0
        %310 = vmatpush1.bf16.msra.mxu0 0
        %311 = vmatprep.subr.bf16.mxu0 0
        %312 = vmatpush1.bf16.msra.mxu0 0
        %313 = vmatprep.subr.bf16.mxu0 0
        %314 = vmatpush1.bf16.msra.mxu0 0
        %315 = vmatprep.subr.bf16.mxu0 0
        %316 = vmatpush1.bf16.msra.mxu0 0
        %317 = vmatprep.mubr.bf16.mxu0 0
        %318 = vmatmul.mubr.bf16.gmra.mrb[0].mxu0 %v215
        %v319 = vpop.f32.mrb[0].mxu0
        %v320 = vadd.f32 %v236, %v319
        %v321 = vpop.f32.mrb[0].mxu0
        %v322 = vpop.f32.mrb[0].mxu0
        %v323 = vpop.f32.mrb[0].mxu0
        %324 = vdwg.mxu0
        %v325 = vxor.u32 %v320, 2147483648
        %v326 = vmul.f32 %v325, 1.442695
        %v327 = vpow.pop %v326
        %v328 = vadd.f32 %v327, 1.0
        %v329 = vrcp.pop %v328
        %v330 = vmul.f32 1.0, %v329
        %v331 = vadd.f32 %v330, %v214
        %332 = vadd.xlane.f32.xlu0 %v331
        %v333 = vpop.xlane.xlu0 %332
        %v334 = vmul.f32 %v333, 0.03125
        %v335 = vmul.f32 %v331, %v331
        %336 = vadd.xlane.f32.xlu0 %v335
        %v337 = vpop.xlane.xlu0 %336
        %v338 = vmul.f32 %v337, 0.03125
        %v339 = vmul.f32 %v334, %v334
        %v340 = vsub.f32 %v338, %v339
        %v341 = vmax.f32 %v340, 0.0
        %v342 = vsub.f32 %v331, %v334
        %v343 = vadd.f32 %v341, 1e-05
        %v344 = vrsqrt.pop %v343
        %v345 = vmul.f32 %v342, %v344
        %v346 = vld [vmem:[%s2 + $0x1] sm:$0x1]
        %v347 = vlaneseq
        %v348 = vshrl.u32 %v347, 7
        %v349 = vsub.s32 0, %v348
        %v350 = vrot.slane %v346, %v349
        %v351 = vmul.f32 %v345, %v350
        %v352 = vld [vmem:[%s2 + $0x2] sm:$0x1]
        %v353 = vlaneseq
        %v354 = vshrl.u32 %v353, 7
        %v355 = vsub.s32 0, %v354
        %v356 = vrot.slane %v352, %v355
        %v357 = vadd.f32 %v351, %v356
        %358 = vst [vmem:[%s212] sm:$0xff] %v357
        %s359 = sand.u32 %s109, 1
        %s360 = scalar_lea.sflag [#allocation4], %s359
        %s361 = sand.u32 %s109, 1
        %s362 = smul.addr %s361, 8
        %s363 = scalar_lea.vmem [#allocation7], %s362
        // Predicated region
        $region41: #{tpu_custom_call.1} parent=31 // pred_check
          %p364 = pneg %p119
        $region42: #{tpu_custom_call.1} parent=31 // pred_check_branch
          %366 = sbr.rel (%p364) target = $region44
        $region43: #{tpu_custom_call.1} parent=31 // pred_region
          %s368 = ssub.s32 128, 128
          %369 = vsyncadd %s360, %s368
          %s370 = smul.addr %s25, 128
          %s371 = scalar_lea.hbm %s3, %s370
          %s373 = sshll.u32 %s363, 4
          %s374 = int_to_ptr.vmem [resolvable:$true] %s373
          %376 = dma.vmem_to_hbm [thread:$0]  %s374, 128, %s371, %s360
        $region44: #{tpu_custom_call.1} parent=31 // pred_fallthru
          _
      $region32: #{tpu_custom_call.1} parent=5 // pred_fallthru
        _
      %p377 = scmp.le.s32.totalorder 2, %s16
      // Predicated region
      $region45: #{tpu_custom_call.1} parent=5 // pred_check
        %p378 = pneg %p377
      $region46: #{tpu_custom_call.1} parent=5 // pred_check_branch
        %380 = sbr.rel (%p378) target = $region48
      $region47: #{tpu_custom_call.1} parent=5 // pred_region
        %s381 = ssub.s32 %s16, 2
        // Predicated region
        $region49: #{tpu_custom_call.1} parent=47 // pred_check
          %p382 = pneg %p125
        $region50: #{tpu_custom_call.1} parent=47 // pred_check_branch
          %384 = sbr.rel (%p382) target = $region52
        $region51: #{tpu_custom_call.1} parent=47 // pred_region
          %s385 = sand.u32 %s110, 1
          %s386 = scalar_lea.sflag [#allocation4], %s385
          %s387 = sand.u32 %s110, 1
          %s388 = smul.addr %s387, 8
          %s389 = scalar_lea.vmem [#allocation7], %s388
          %390 = dma.done %s386, 128
        $region52: #{tpu_custom_call.1} parent=47 // pred_fallthru
          _
      $region48: #{tpu_custom_call.1} parent=5 // pred_fallthru
        _
    $region6: #{tpu_custom_call.1} parent=1 // loop_footer
      %s20 = sadd.s32 1, %s16
    $region7: #{tpu_custom_call.1} parent=1 // loop_footer_branch
      %15 = sbr.rel target = $region3
    $region8: #{tpu_custom_call.1} parent=1 // loop_exit
      _
    %391 = vsyncpa [#allocation3], 1
    %s392 = scalar_lea.sflag [#allocation3], 1
    %393 = vsyncpa %s392, 1
    %394 = vsyncpa [#allocation6], 1
    %395 = vsyncpa [#allocation4], 1
    %s396 = scalar_lea.sflag [#allocation4], 1
    %397 = vsyncpa %s396, 1

// kernel: tpu_custom_call.1
$region0: #{tpu_custom_call.1}
  #allocation0 [shape = 'u32[]', space=smem, size = 0x4, offset = 0x4, fixed_abs, tag = 'smem constant byte address 0x4 - core index']
  #allocation1 [shape = 'u32[144,128]{1,0:T(1,128)}', space=vmem, size = 0x12000, scoped, tag = 'internal scratch']
  %s0 = inlined_call_operand.hbm [shape: f32[16,128], index: 0, kind: input, shape index: {}]
  %s1 = inlined_call_operand.hbm [shape: bf16[128,128], index: 1, kind: input, shape index: {}]
  %s2 = inlined_call_operand.vmem [shape: f32[3,128], index: 2, kind: input, shape index: {}]
  %s3 = inlined_call_operand.hbm [shape: f32[16,128], index: 3, kind: output, shape index: {}]
  %s4 = sld [smem:[#allocation0]]
  $region53: #{tpu_custom_call.1} parent=0
    _
  %s6 = ssub.s32 1, %s4
  %s7 = scalar_select 0, %s6, %s4
  $region1: #{tpu_custom_call.1} parent=0
    #allocation2 [shape = 'u8[8192]{0}', space=vmem, size = 0x2000, scoped, tag = 'input window, operand 0']
    #allocation3 [shape = 's32[2]{0}', space=sflag, size = 0x8, scoped, tag = 'scoped memory for tpu_custom_call.1']
    #allocation4 [shape = 's32[2]{0}', space=sflag, size = 0x8, scoped, tag = 'scoped memory for tpu_custom_call.1']
    #allocation5 [shape = 'u8[32768]{0}', space=vmem, size = 0x8000, scoped, tag = 'input window, operand 1, single buffered']
    #allocation6 [shape = 's32[1]{0}', space=sflag, size = 0x4, scoped, tag = 'scoped memory for tpu_custom_call.1']
    #allocation7 [shape = 'u8[8192]{0}', space=vmem, size = 0x2000, scoped, tag = 'output window, operand 0']
    %8 = vsyncpa [#allocation3], 0
    %s9 = scalar_lea.sflag [#allocation3], 1
    %10 = vsyncpa %s9, 0
    %11 = vsyncpa [#allocation6], 0
    %12 = vsyncpa [#allocation4], 0
    %s13 = scalar_lea.sflag [#allocation4], 1
    %14 = vsyncpa %s13, 0
    loop: start=0, step=1, limit=4
    $region2: #{tpu_custom_call.1} parent=1 // loop_pre_header
      _
    $region3: #{tpu_custom_call.1} parent=1 // loop_header
      %s16 = sphi 0, %s20
      %p17 = scmp.ge.s32.totalorder %s16, 4
      %s23 = sphi 0, %s35
      %s24 = sphi 0, %s31
      %s25 = sphi 0, %s23
      %s26 = sphi 0, %s24
      %s27 = sphi 0, %s25
      %s28 = sphi 0, %s26
      %s38 = sphi 0, %s40
      %s41 = sphi 0, %s38
      %s42 = sphi 0, %s41
      %s58 = sphi 0, %s42
      %s62 = sphi 0, %s62
      %s64 = sphi 0, %s62
      %s65 = sphi 0, %s64
      %s79 = sphi 0, %s65
      %s83 = sphi 0, %s83
      %s85 = sphi 0, %s83
      %s86 = sphi 0, %s85
      %s100 = sphi 0, %s86
      %s106 = sphi 0, %s108
      %s109 = sphi 0, %s106
      %s110 = sphi 0, %s109
      %s126 = sphi 0, %s110
    $region4: #{tpu_custom_call.1} parent=1 // loop_header_branch
      %19 = sbr.rel (%p17) target = $region8
    $region5: #{tpu_custom_call.1} parent=1 // loop_body
      %s21 = ssub.s32 %s16, 1
      %s22 = ssub.s32 %s16, 2
      %s29 = sadd.s32 1, %s24
      %p30 = scmp.ge.s32.totalorder %s29, 1
      %s31 = scalar_select %p30, 0, %s29
      %s32 = sadd.s32 1, %s23
      %s33 = scalar_select %p30, %s32, %s23
      %p34 = scmp.ge.s32.totalorder %s33, 2
      %s35 = scalar_select %p34, 0, %s33
      %s36 = ssub.s32 %s23, %s35
      %p37 = scmp.eq.s32.totalorder %s36, 0
      %s39 = sadd.s32 %s38, 1
      %s40 = scalar_select %p37, %s38, %s39
      %p43 = pneg %p37
      %p44 = scmp.eq.s32.totalorder %s16, 1
      %p45 = por %p43, %p44
      %p46 = scmp.ne.s32.totalorder %s38, %s41
      %p47 = scmp.eq.s32.totalorder %s16, 0
      %p48 = por %p46, %p47
      %p49 = scmp.ne.s32.totalorder %s38, %s41
      %p50 = scmp.eq.s32.totalorder %s21, 1
      %p51 = por %p49, %p50
      %p52 = scmp.ne.s32.totalorder %s41, %s42
      %p53 = scmp.eq.s32.totalorder %s21, 0
      %p54 = por %p52, %p53
      %p55 = scmp.ne.s32.totalorder %s41, %s42
      %p56 = scmp.eq.s32.totalorder %s22, 1
      %p57 = por %p55, %p56
      %p59 = scmp.ne.s32.totalorder %s42, %s58
      %p60 = scmp.eq.s32.totalorder %s22, 0
      %p61 = por %p59, %p60
      %s63 = sadd.s32 %s62, 1
      %p66 = scmp.eq.s32.totalorder %s16, 1
      %p67 = scmp.ne.s32.totalorder %s62, %s64
      %p68 = scmp.eq.s32.totalorder %s16, 0
      %p69 = por %p67, %p68
      %p70 = scmp.ne.s32.totalorder %s62, %s64
      %p71 = scmp.eq.s32.totalorder %s21, 1
      %p72 = por %p70, %p71
      %p73 = scmp.ne.s32.totalorder %s64, %s65
      %p74 = scmp.eq.s32.totalorder %s21, 0
      %p75 = por %p73, %p74
      %p76 = scmp.ne.s32.totalorder %s64, %s65
      %p77 = scmp.eq.s32.totalorder %s22, 1
      %p78 = por %p76, %p77
      %p80 = scmp.ne.s32.totalorder %s65, %s79
      %p81 = scmp.eq.s32.totalorder %s22, 0
      %p82 = por %p80, %p81
      %s84 = sadd.s32 %s83, 1
      %p87 = scmp.eq.s32.totalorder %s16, 1
      %p88 = scmp.ne.s32.totalorder %s83, %s85
      %p89 = scmp.eq.s32.totalorder %s16, 0
      %p90 = por %p88, %p89
      %p91 = scmp.ne.s32.totalorder %s83, %s85
      %p92 = scmp.eq.s32.totalorder %s21, 1
      %p93 = por %p91, %p92
      %p94 = scmp.ne.s32.totalorder %s85, %s86
      %p95 = scmp.eq.s32.totalorder %s21, 0
      %p96 = por %p94, %p95
      %p97 = scmp.ne.s32.totalorder %s85, %s86
      %p98 = scmp.eq.s32.totalorder %s22, 1
      %p99 = por %p97, %p98
      %p101 = scmp.ne.s32.totalorder %s86, %s100
      %p102 = scmp.eq.s32.totalorder %s22, 0
      %p103 = por %p101, %p102
      %s104 = ssub.s32 %s23, %s35
      %p105 = scmp.eq.s32.totalorder %s104, 0
      %s107 = sadd.s32 %s106, 1
      %s108 = scalar_select %p105, %s106, %s107
      %p111 = pneg %p105
      %p112 = scmp.eq.s32.totalorder %s16, 1
      %p113 = por %p111, %p112
      %p114 = scmp.ne.s32.totalorder %s106, %s109
      %p115 = scmp.eq.s32.totalorder %s16, 0
      %p116 = por %p114, %p115
      %p117 = scmp.ne.s32.totalorder %s106, %s109
      %p118 = scmp.eq.s32.totalorder %s21, 1
      %p119 = por %p117, %p118
      %p120 = scmp.ne.s32.totalorder %s109, %s110
      %p121 = scmp.eq.s32.totalorder %s21, 0
      %p122 = por %p120, %p121
      %p123 = scmp.ne.s32.totalorder %s109, %s110
      %p124 = scmp.eq.s32.totalorder %s22, 1
      %p125 = por %p123, %p124
      %p127 = scmp.ne.s32.totalorder %s110, %s126
      %p128 = scmp.eq.s32.totalorder %s22, 0
      %p129 = por %p127, %p128
      %p130 = scmp.le.s32.totalorder 1, %s16
      %p131 = scmp.lt.s32.totalorder %s16, 3
      %p132 = pnand %p130, %p131
      %p133 = pneg %p132
      // Predicated region
      $region9: #{tpu_custom_call.1} parent=5 // pred_check
        _
      $region10: #{tpu_custom_call.1} parent=5 // pred_check_branch
        %135 = sbr.rel (%p132) target = $region12
      $region11: #{tpu_custom_call.1} parent=5 // pred_region
        %s136 = ssub.s32 %s16, 1
        // Predicated region
        $region13: #{tpu_custom_call.1} parent=11 // pred_check
          %p137 = pneg %p75
        $region14: #{tpu_custom_call.1} parent=11 // pred_check_branch
          %139 = sbr.rel (%p137) target = $region16
        $region15: #{tpu_custom_call.1} parent=11 // pred_region
          %s141 = ssub.s32 1024, 1024
          %142 = vsyncadd [#allocation6], %s141
          %s143 = sshll.u32 [#allocation5], 4
          %s144 = int_to_ptr.vmem [resolvable:$true] %s143
          %149 = dma.hbm_to_vmem [thread:$0]  %s1, 1024, %s144, [#allocation6], 64, 64, 4
        $region16: #{tpu_custom_call.1} parent=11 // pred_fallthru
          _
        // Predicated region
        $region17: #{tpu_custom_call.1} parent=11 // pred_check
          %p150 = pneg %p96
        $region18: #{tpu_custom_call.1} parent=11 // pred_check_branch
          %152 = sbr.rel (%p150) target = $region20
        $region19: #{tpu_custom_call.1} parent=11 // pred_region
          _
        $region20: #{tpu_custom_call.1} parent=11 // pred_fallthru
          _
      $region12: #{tpu_custom_call.1} parent=5 // pred_fallthru
        _
      %p153 = scmp.lt.s32.totalorder %s16, 2
      // Predicated region
      $region21: #{tpu_custom_call.1} parent=5 // pred_check
        %p154 = pneg %p153
      $region22: #{tpu_custom_call.1} parent=5 // pred_check_branch
        %156 = sbr.rel (%p154) target = $region24
      $region23: #{tpu_custom_call.1} parent=5 // pred_region
        // Predicated region
        $region25: #{tpu_custom_call.1} parent=23 // pred_check
          %p157 = pneg %p48
        $region26: #{tpu_custom_call.1} parent=23 // pred_check_branch
          %159 = sbr.rel (%p157) target = $region28
        $region27: #{tpu_custom_call.1} parent=23 // pred_region
          %s160 = sand.u32 %s38, 1
          %s161 = scalar_lea.sflag [#allocation3], %s160
          %s162 = sand.u32 %s38, 1
          %s163 = smul.addr %s162, 8
          %s164 = scalar_lea.vmem [#allocation2], %s163
          %s166 = ssub.s32 128, 128
          %167 = vsyncadd %s161, %s166
          %s168 = smul.addr %s23, 128
          %s169 = scalar_lea.hbm %s0, %s168
          %s171 = sshll.u32 %s164, 4
          %s172 = int_to_ptr.vmem [resolvable:$true] %s171
          %174 = dma.hbm_to_vmem [thread:$0]  %s169, 128, %s172, %s161
        $region28: #{tpu_custom_call.1} parent=23 // pred_fallthru
          _
      $region24: #{tpu_custom_call.1} parent=5 // pred_fallthru
        _
      %p175 = scmp.le.s32.totalorder 1, %s16
      %p176 = scmp.lt.s32.totalorder %s16, 3
      %p177 = pnand %p175, %p176
      %p178 = pneg %p177
      // Predicated region
      $region29: #{tpu_custom_call.1} parent=5 // pred_check
        _
      $region30: #{tpu_custom_call.1} parent=5 // pred_check_branch
        %180 = sbr.rel (%p177) target = $region32
      $region31: #{tpu_custom_call.1} parent=5 // pred_region
        %s181 = ssub.s32 %s16, 1
        %s182 = sand.u32 %s41, 1
        %s183 = scalar_lea.sflag [#allocation3], %s182
        %s184 = sand.u32 %s41, 1
        %s185 = smul.addr %s184, 8
        %s186 = scalar_lea.vmem [#allocation2], %s185
        // Predicated region
        $region33: #{tpu_custom_call.1} parent=31 // pred_check
          %p187 = pneg %p54
        $region34: #{tpu_custom_call.1} parent=31 // pred_check_branch
          %189 = sbr.rel (%p187) target = $region36
        $region35: #{tpu_custom_call.1} parent=31 // pred_region
          %190 = dma.done %s183, 128
        $region36: #{tpu_custom_call.1} parent=31 // pred_fallthru
          _
        // Predicated region
        $region37: #{tpu_custom_call.1} parent=31 // pred_check
          %p191 = pneg %p75
        $region38: #{tpu_custom_call.1} parent=31 // pred_check_branch
          %193 = sbr.rel (%p191) target = $region40
        $region39: #{tpu_custom_call.1} parent=31 // pred_region
          %194 = dma.done [#allocation6], 1024
        $region40: #{tpu_custom_call.1} parent=31 // pred_fallthru
          _
        %s195 = sand.u32 %s41, 1
        %s196 = scalar_lea.sflag [#allocation3], %s195
        %s197 = sand.u32 %s41, 1
        %s198 = smul.addr %s197, 8
        %s199 = scalar_lea.vmem [#allocation2], %s198
        %p200 = pneg %p54
        %p201 = pneg %p51
        %p202 = pneg %p75
        %p203 = pneg %p72
        %p204 = pneg %p96
        %p205 = pneg %p93
        %p206 = pneg %p122
        %p207 = pneg %p119
        %s208 = sand.u32 %s109, 1
        %s209 = scalar_lea.sflag [#allocation4], %s208
        %s210 = sand.u32 %s109, 1
        %s211 = smul.addr %s210, 8
        %s212 = scalar_lea.vmem [#allocation7], %s211
        %v214 = vld [vmem:[%s186] sm:$0xff]
        %v215 = vpack.c.bf16 %v214, %v214
        %v216 = vld [vmem:[#allocation5] sm:$0xf]
        %v217 = vld [vmem:[#allocation5 + $0x4] sm:$0xf]
        %v218 = vld [vmem:[#allocation5 + $0x8] sm:$0xf]
        %v219 = vld [vmem:[#allocation5 + $0xc] sm:$0xf]
        %v220 = vld [vmem:[#allocation5 + $0x10] sm:$0xf]
        %v221 = vld [vmem:[#allocation5 + $0x14] sm:$0xf]
        %v222 = vld [vmem:[#allocation5 + $0x18] sm:$0xf]
        %v223 = vld [vmem:[#allocation5 + $0x1c] sm:$0xf]
        %v224 = vld [vmem:[#allocation5 + $0x20] sm:$0xf]
        %v225 = vld [vmem:[#allocation5 + $0x24] sm:$0xf]
        %v226 = vld [vmem:[#allocation5 + $0x28] sm:$0xf]
        %v227 = vld [vmem:[#allocation5 + $0x2c] sm:$0xf]
        %v228 = vld [vmem:[#allocation5 + $0x30] sm:$0xf]
        %v229 = vld [vmem:[#allocation5 + $0x34] sm:$0xf]
        %v230 = vld [vmem:[#allocation5 + $0x38] sm:$0xf]
        %v231 = vld [vmem:[#allocation5 + $0x3c] sm:$0xf]
        %v232 = vld [vmem:[%s2] sm:$0x1]
        %v233 = vlaneseq
        %v234 = vshrl.u32 %v233, 7
        %v235 = vsub.s32 0, %v234
        %v236 = vrot.slane %v232, %v235
        %v253 = vunpack.c.l.b16 %v216
        %v254 = vunpack.c.l.b16 %v217
        %v255 = vunpack.c.l.b16 %v218
        %v256 = vunpack.c.l.b16 %v219
        %v257 = vunpack.c.l.b16 %v220
        %v258 = vunpack.c.l.b16 %v221
        %v259 = vunpack.c.l.b16 %v222
        %v260 = vunpack.c.l.b16 %v223
        %v261 = vunpack.c.l.b16 %v224
        %v262 = vunpack.c.l.b16 %v225
        %v263 = vunpack.c.l.b16 %v226
        %v264 = vunpack.c.l.b16 %v227
        %v265 = vunpack.c.l.b16 %v228
        %v266 = vunpack.c.l.b16 %v229
        %v267 = vunpack.c.l.b16 %v230
        %v268 = vunpack.c.l.b16 %v231
        %v269 = vpack.c.b16 %v254, %v253
        %v270 = vpack.c.b16 %v256, %v255
        %v271 = vpack.c.b16 %v258, %v257
        %v272 = vpack.c.b16 %v260, %v259
        %v273 = vpack.c.b16 %v262, %v261
        %v274 = vpack.c.b16 %v264, %v263
        %v275 = vpack.c.b16 %v266, %v265
        %v276 = vpack.c.b16 %v268, %v267
        %285 = vmatprep.subr.bf16.mxu0 0
        %286 = vmatpush1.bf16.msra.mxu0 %v269
        %287 = vmatprep.subr.bf16.mxu0 0
        %288 = vmatpush1.bf16.msra.mxu0 %v270
        %289 = vmatprep.subr.bf16.mxu0 0
        %290 = vmatpush1.bf16.msra.mxu0 %v271
        %291 = vmatprep.subr.bf16.mxu0 0
        %292 = vmatpush1.bf16.msra.mxu0 %v272
        %293 = vmatprep.subr.bf16.mxu0 0
        %294 = vmatpush1.bf16.msra.mxu0 %v273
        %295 = vmatprep.subr.bf16.mxu0 0
        %296 = vmatpush1.bf16.msra.mxu0 %v274
        %297 = vmatprep.subr.bf16.mxu0 0
        %298 = vmatpush1.bf16.msra.mxu0 %v275
        %299 = vmatprep.subr.bf16.mxu0 0
        %300 = vmatpush1.bf16.msra.mxu0 %v276
        %301 = vmatprep.subr.bf16.mxu0 0
        %302 = vmatpush1.bf16.msra.mxu0 0
        %303 = vmatprep.subr.bf16.mxu0 0
        %304 = vmatpush1.bf16.msra.mxu0 0
        %305 = vmatprep.subr.bf16.mxu0 0
        %306 = vmatpush1.bf16.msra.mxu0 0
        %307 = vmatprep.subr.bf16.mxu0 0
        %308 = vmatpush1.bf16.msra.mxu0 0
        %309 = vmatprep.subr.bf16.mxu0 0
        %310 = vmatpush1.bf16.msra.mxu0 0
        %311 = vmatprep.subr.bf16.mxu0 0
        %312 = vmatpush1.bf16.msra.mxu0 0
        %313 = vmatprep.subr.bf16.mxu0 0
        %314 = vmatpush1.bf16.msra.mxu0 0
        %315 = vmatprep.subr.bf16.mxu0 0
        %316 = vmatpush1.bf16.msra.mxu0 0
        %317 = vmatprep.mubr.bf16.mxu0 0
        %318 = vmatmul.mubr.bf16.gmra.mrb[0].mxu0 %v215
        %v319 = vpop.f32.mrb[0].mxu0
        %v320 = vadd.f32 %v236, %v319
        %v321 = vpop.f32.mrb[0].mxu0
        %v322 = vpop.f32.mrb[0].mxu0
        %v323 = vpop.f32.mrb[0].mxu0
        %324 = vdwg.mxu0
        %v325 = vxor.u32 %v320, 2147483648
        %v326 = vmul.f32 %v325, 1.442695
        %v327 = vpow.pop %v326
        %v328 = vadd.f32 %v327, 1.0
        %v329 = vrcp.pop %v328
        %v330 = vmul.f32 1.0, %v329
        %v331 = vadd.f32 %v330, %v214
        %332 = vadd.xlane.f32.xlu0 %v331
        %v333 = vpop.xlane.xlu0 %332
        %v334 = vmul.f32 %v333, 0.03125
        %v335 = vmul.f32 %v331, %v331
        %336 = vadd.xlane.f32.xlu0 %v335
        %v337 = vpop.xlane.xlu0 %336
        %v338 = vmul.f32 %v337, 0.03125
        %v339 = vmul.f32 %v334, %v334
        %v340 = vsub.f32 %v338, %v339
        %v341 = vmax.f32 %v340, 0.0
        %v342 = vsub.f32 %v331, %v334
        %v343 = vadd.f32 %v341, 1e-05
        %v344 = vrsqrt.pop %v343
        %v345 = vmul.f32 %v342, %v344
        %v346 = vld [vmem:[%s2 + $0x1] sm:$0x1]
        %v347 = vlaneseq
        %v348 = vshrl.u32 %v347, 7
        %v349 = vsub.s32 0, %v348
        %v350 = vrot.slane %v346, %v349
        %v351 = vmul.f32 %v345, %v350
        %v352 = vld [vmem:[%s2 + $0x2] sm:$0x1]
        %v353 = vlaneseq
        %v354 = vshrl.u32 %v353, 7
        %v355 = vsub.s32 0, %v354
        %v356 = vrot.slane %v352, %v355
        %v357 = vadd.f32 %v351, %v356
        %358 = vst [vmem:[%s212] sm:$0xff] %v357
        %s359 = sand.u32 %s109, 1
        %s360 = scalar_lea.sflag [#allocation4], %s359
        %s361 = sand.u32 %s109, 1
        %s362 = smul.addr %s361, 8
        %s363 = scalar_lea.vmem [#allocation7], %s362
        // Predicated region
        $region41: #{tpu_custom_call.1} parent=31 // pred_check
          %p364 = pneg %p119
        $region42: #{tpu_custom_call.1} parent=31 // pred_check_branch
          %366 = sbr.rel (%p364) target = $region44
        $region43: #{tpu_custom_call.1} parent=31 // pred_region
          %s368 = ssub.s32 128, 128
          %369 = vsyncadd %s360, %s368
          %s370 = smul.addr %s25, 128
          %s371 = scalar_lea.hbm %s3, %s370
          %s373 = sshll.u32 %s363, 4
          %s374 = int_to_ptr.vmem [resolvable:$true] %s373
          %376 = dma.vmem_to_hbm [thread:$0]  %s374, 128, %s371, %s360
        $region44: #{tpu_custom_call.1} parent=31 // pred_fallthru
          _
      $region32: #{tpu_custom_call.1} parent=5 // pred_fallthru
        _
      %p377 = scmp.le.s32.totalorder 2, %s16
      // Predicated region
      $region45: #{tpu_custom_call.1} parent=5 // pred_check
        %p378 = pneg %p377
      $region46: #{tpu_custom_call.1} parent=5 // pred_check_branch
        %380 = sbr.rel (%p378) target = $region48
      $region47: #{tpu_custom_call.1} parent=5 // pred_region
        %s381 = ssub.s32 %s16, 2
        // Predicated region
        $region49: #{tpu_custom_call.1} parent=47 // pred_check
          %p382 = pneg %p125
        $region50: #{tpu_custom_call.1} parent=47 // pred_check_branch
          %384 = sbr.rel (%p382) target = $region52
        $region51: #{tpu_custom_call.1} parent=47 // pred_region
          %s385 = sand.u32 %s110, 1
          %s386 = scalar_lea.sflag [#allocation4], %s385
          %s387 = sand.u32 %s110, 1
          %s388 = smul.addr %s387, 8
          %s389 = scalar_lea.vmem [#allocation7], %s388
          %390 = dma.done %s386, 128
        $region52: #{tpu_custom_call.1} parent=47 // pred_fallthru
          _
      $region48: #{tpu_custom_call.1} parent=5 // pred_fallthru
        _
    $region6: #{tpu_custom_call.1} parent=1 // loop_footer
      %s20 = sadd.s32 1, %s16
    $region7: #{tpu_custom_call.1} parent=1 // loop_footer_branch
      %15 = sbr.rel target = $region3
    $region8: #{tpu_custom_call.1} parent=1 // loop_exit
      _
    %391 = vsyncpa [#allocation3], 1
    %s392 = scalar_lea.sflag [#allocation3], 1
    %393 = vsyncpa %s392, 1
    %394 = vsyncpa [#allocation6], 1
    %395 = vsyncpa [#allocation4], 1
    %s396 = scalar_lea.sflag [#allocation4], 1
    %397 = vsyncpa %s396, 1

</llo_original>
